<compile_context>
chip_gen: v5e
topology: v5e:2x2
jax: 0.10.0
libtpu: 0.0.40
codegen_flags: <defaults>
</compile_context>

<pallas_src>
import functools

import jax
import jax.numpy as jnp
from jax.experimental import pallas as pl
from jax.experimental.pallas import tpu as pltpu


def _round_up(n, m):
    return -(-n // m) * m


def _choose_b_tile(B):
    """Batch-tile heuristic: big tiles to amortize per-step overhead, but
    >=2 grid steps for large B (v7x megacore) and <=512 rows so the
    double-buffered x/recon tiles fit the scoped-VMEM default on all gens."""
    if B <= 16:
        return _round_up(B, 8)
    half = _round_up(_round_up(B, 2) // 2, 8)
    return min(512, half)


def vae_forward_kernel(
    x_ref, eps_ref,
    w1_ref, b1_ref,            # encoder: D -> HID        (bf16 W, f32 b)
    wh_ref, bh_ref,            # fused heads: HID -> P    (mu | logvar | zero-pad)
    w3_ref, b3_ref,            # decoder: L -> HID
    w4_ref, b4_ref,            # decoder: HID -> D
    recon_ref, moments_ref,
    *, latent_dim,
):
    x = x_ref[...].astype(jnp.bfloat16)                          # [Bt, D]

    # ---- encoder ----
    h = jnp.dot(x, w1_ref[...], preferred_element_type=jnp.float32) + b1_ref[...]
    h = jnp.maximum(h, 0.0)                                      # ReLU, f32

    # ---- fused mu/logvar heads: one MXU pass, lane-dense [Bt, P] result ----
    moments = jnp.dot(h.astype(jnp.bfloat16), wh_ref[...],
                      preferred_element_type=jnp.float32) + bh_ref[...]
    mu = moments[:, :latent_dim]
    logvar = moments[:, latent_dim:2 * latent_dim]

    # ---- reparameterize: z = mu + exp(0.5*logvar) * eps ----
    std = jnp.exp(0.5 * logvar)
    z = mu + std * eps_ref[...]

    # ---- decoder ----
    hd = jnp.dot(z.astype(jnp.bfloat16), w3_ref[...],
                 preferred_element_type=jnp.float32) + b3_ref[...]
    hd = jnp.maximum(hd, 0.0)
    logits = jnp.dot(hd.astype(jnp.bfloat16), w4_ref[...],
                     preferred_element_type=jnp.float32) + b4_ref[...]

    # ---- numerically stable sigmoid ----
    # exp argument is always <= 0 (no overflow); reciprocal runs on the EUP.
    e = jnp.exp(-jnp.abs(logits))                                # in (0, 1]
    inv = pl.reciprocal(1.0 + e, approx=True)                    # 1/(1+e)
    recon = jnp.where(logits >= 0, inv, e * inv)

    recon_ref[...] = recon                                       # [Bt, D]  lane-dense
    moments_ref[...] = moments                                   # [Bt, P]  lane-dense


def prepare_params(params):
    """One-time parameter prep: fuse mu/logvar heads, zero-pad them to a
    lane-dense 128-column slab, cast matmul weights to bf16."""
    (w1, b1, wmu, bmu, wlv, blv, w3, b3, w4, b4) = params
    HID = w1.shape[1]
    L = wmu.shape[1]
    P = max(128, _round_up(2 * L, 128))                          # lane-dense head width

    wh = jnp.zeros((HID, P), jnp.float32)
    wh = wh.at[:, :L].set(wmu).at[:, L:2 * L].set(wlv)
    bh = jnp.zeros((1, P), jnp.float32)
    bh = bh.at[:, :L].set(bmu).at[:, L:2 * L].set(blv)

    return dict(
        w1=w1.astype(jnp.bfloat16), b1=b1,
        wh=wh.astype(jnp.bfloat16), bh=bh,
        w3=w3.astype(jnp.bfloat16), b3=b3,
        w4=w4.astype(jnp.bfloat16), b4=b4,
        latent_dim=L, moments_pad=P, hidden_dim=HID,
    )


def vae_forward(x_nchw, eps, prep):
    """x_nchw: [B, C, H, W] f32. Returns (recon_nchw, x_nchw, mu, logvar)."""
    B, C, H, W = x_nchw.shape
    D = C * H * W
    x_flat = x_nchw.reshape(B, D)                                # torch.flatten(x, 1); no copy

    L = prep["latent_dim"]
    P = prep["moments_pad"]
    HID = prep["hidden_dim"]

    B_TILE = _choose_b_tile(B)
    grid = (pl.cdiv(B, B_TILE),)                                 # ragged last tile, no jnp.pad
    row = lambda i: (i, 0)                                       # batch-tiled arrays
    rep = lambda i: (0, 0)                                       # weights/biases: same block every step

    recon_flat, moments = pl.pallas_call(
        functools.partial(vae_forward_kernel, latent_dim=L),
        out_shape=(
            jax.ShapeDtypeStruct((B, D), jnp.float32),           # recon (f32 to match module output)
            jax.ShapeDtypeStruct((B, P), jnp.float32),           # packed mu|logvar, lane-dense
        ),
        grid=grid,
        in_specs=[
            pl.BlockSpec((B_TILE, D), row),                      # x
            pl.BlockSpec((B_TILE, L), row),                      # eps
            pl.BlockSpec((D, HID), rep), pl.BlockSpec((1, HID), rep),   # w1, b1
            pl.BlockSpec((HID, P), rep), pl.BlockSpec((1, P), rep),     # wh, bh
            pl.BlockSpec((L, HID), rep), pl.BlockSpec((1, HID), rep),   # w3, b3
            pl.BlockSpec((HID, D), rep), pl.BlockSpec((1, D), rep),     # w4, b4
        ],
        out_specs=(
            pl.BlockSpec((B_TILE, D), row),
            pl.BlockSpec((B_TILE, P), row),
        ),
        compiler_params=pltpu.CompilerParams(
            dimension_semantics=("parallel",),                   # megacore sharding on v7x
        ),
    )(x_flat, eps,
      prep["w1"], prep["b1"], prep["wh"], prep["bh"],
      prep["w3"], prep["b3"], prep["w4"], prep["b4"])

    recon = recon_flat.reshape(B, C, H, W)
    mu = moments[:, :L]
    logvar = moments[:, L:2 * L]
    return recon, x_nchw, mu, logvar


def vae_forward_ref(x_nchw, eps, params):
    """Pure-JAX reference (f32 weights) for a loose correctness check."""
    B = x_nchw.shape[0]
    x = x_nchw.reshape(B, -1)
    (w1, b1, wmu, bmu, wlv, blv, w3, b3, w4, b4) = params
    h = jnp.maximum(x @ w1 + b1, 0.0)
    mu = h @ wmu + bmu
    logvar = h @ wlv + blv
    z = mu + jnp.exp(0.5 * logvar) * eps
    hd = jnp.maximum(z @ w3 + b3, 0.0)
    recon = jax.nn.sigmoid(hd @ w4 + b4)
    return recon.reshape(x_nchw.shape), mu, logvar


def init_params(key, D, HID, L):
    ks = jax.random.split(key, 5)

    def lin(k, fan_in, fan_out):
        scale = 1.0 / jnp.sqrt(jnp.float32(fan_in))
        w = jax.random.uniform(k, (fan_in, fan_out), jnp.float32, -scale, scale)
        b = jnp.zeros((1, fan_out), jnp.float32)
        return w, b

    w1, b1 = lin(ks[0], D, HID)
    wmu, bmu = lin(ks[1], HID, L)
    wlv, blv = lin(ks[2], HID, L)
    w3, b3 = lin(ks[3], L, HID)
    w4, b4 = lin(ks[4], HID, D)
    return (w1, b1, wmu, bmu, wlv, blv, w3, b3, w4, b4)


if __name__ == "__main__":
    key = jax.random.PRNGKey(0)
    k_x, k_eps, k_p = jax.random.split(key, 3)

    B, C, Hs, Ws = 2, 4, 16, 16
    D = C * Hs * Ws
    HID, L = 32, 8

    x = jax.random.uniform(k_x, (B, C, Hs, Ws), jnp.float32)     # image-like input in [0,1)
    eps = jax.random.normal(k_eps, (B, L), jnp.float32)          # deterministic reparam noise
    params = init_params(k_p, D, HID, L)
    prep = prepare_params(params)                                # hoisted out of the per-call path

    recon, x_out, mu, logvar = vae_forward(x, eps, prep)
    jax.block_until_ready((recon, x_out, mu, logvar))

    assert recon.shape == (B, C, Hs, Ws) and recon.dtype == jnp.float32
    assert mu.shape == (B, L) and logvar.shape == (B, L)
    assert bool(jnp.all(jnp.isfinite(recon)))
    assert bool(jnp.all(jnp.isfinite(mu))) and bool(jnp.all(jnp.isfinite(logvar)))

    # Loose numerical check vs. f32 reference (kernel uses bf16 weights + approx recip).
    recon_r, mu_r, logvar_r = vae_forward_ref(x, eps, params)
    assert bool(jnp.max(jnp.abs(recon - recon_r)) < 5e-2)
    assert bool(jnp.max(jnp.abs(mu - mu_r)) < 5e-2)
    assert bool(jnp.max(jnp.abs(logvar - logvar_r)) < 5e-2)

    print("KERNEL_OK")
</pallas_src>

<mosaic_0001>
module attributes {stable_mosaic.version = 11 : i64} {
  func.func @vae_forward_kernel(%arg0: i32, %arg1: memref<8x1024xf32, #tpu.memory_space<vmem>>, %arg2: memref<8x8xf32, #tpu.memory_space<vmem>>, %arg3: memref<1024x32xbf16, #tpu.memory_space<vmem>>, %arg4: memref<1x32xf32, #tpu.memory_space<vmem>>, %arg5: memref<32x128xbf16, #tpu.memory_space<vmem>>, %arg6: memref<1x128xf32, #tpu.memory_space<vmem>>, %arg7: memref<8x32xbf16, #tpu.memory_space<vmem>>, %arg8: memref<1x32xf32, #tpu.memory_space<vmem>>, %arg9: memref<32x1024xbf16, #tpu.memory_space<vmem>>, %arg10: memref<1x1024xf32, #tpu.memory_space<vmem>>, %arg11: memref<8x1024xf32, #tpu.memory_space<vmem>>, %arg12: memref<8x128xf32, #tpu.memory_space<vmem>>) attributes {dimension_semantics = [#tpu.dimension_semantics<parallel>], iteration_bounds = array<i64: 1>, scalar_prefetch = 0 : i64, scratch_operands = 0 : i64, tpu.core_type = #tpu.core_type<tc>, window_params = [{transform_indices = @transform_0, window_bounds = array<i64: 8, 1024>}, {transform_indices = @transform_1, window_bounds = array<i64: 8, 8>}, {pipeline_mode = #tpu.pipeline_mode<synchronous>, transform_indices = @transform_2, window_bounds = array<i64: 1024, 32>}, {pipeline_mode = #tpu.pipeline_mode<synchronous>, transform_indices = @transform_3, window_bounds = array<i64: 1, 32>}, {pipeline_mode = #tpu.pipeline_mode<synchronous>, transform_indices = @transform_4, window_bounds = array<i64: 32, 128>}, {pipeline_mode = #tpu.pipeline_mode<synchronous>, transform_indices = @transform_5, window_bounds = array<i64: 1, 128>}, {pipeline_mode = #tpu.pipeline_mode<synchronous>, transform_indices = @transform_6, window_bounds = array<i64: 8, 32>}, {pipeline_mode = #tpu.pipeline_mode<synchronous>, transform_indices = @transform_7, window_bounds = array<i64: 1, 32>}, {pipeline_mode = #tpu.pipeline_mode<synchronous>, transform_indices = @transform_8, window_bounds = array<i64: 32, 1024>}, {pipeline_mode = #tpu.pipeline_mode<synchronous>, transform_indices = @transform_9, window_bounds = array<i64: 1, 1024>}, {transform_indices = @transform_10, window_bounds = array<i64: 8, 1024>}, {transform_indices = @transform_11, window_bounds = array<i64: 8, 128>}]} {
    %c0 = arith.constant 0 : index
    %c0_0 = arith.constant 0 : index
    %0 = vector.load %arg1[%c0, %c0_0] : memref<8x1024xf32, #tpu.memory_space<vmem>>, vector<8x1024xf32>
    %1 = arith.truncf %0 : vector<8x1024xf32> to vector<8x1024xbf16>
    %c0_1 = arith.constant 0 : index
    %c0_2 = arith.constant 0 : index
    %2 = vector.load %arg3[%c0_1, %c0_2] : memref<1024x32xbf16, #tpu.memory_space<vmem>>, vector<1024x32xbf16>
    %cst = arith.constant dense<0.000000e+00> : vector<8x32xf32>
    %3 = tpu.matmul %1, %2, %cst {dimension_numbers = #tpu.dot_dimension_numbers<[1], [0], [0], [1], [0, 0, 1, 1], [], []>} : vector<8x1024xbf16>, vector<1024x32xbf16>, vector<8x32xf32> -> vector<8x32xf32>
    %c0_3 = arith.constant 0 : index
    %c0_4 = arith.constant 0 : index
    %4 = vector.load %arg4[%c0_3, %c0_4] : memref<1x32xf32, #tpu.memory_space<vmem>>, vector<1x32xf32>
    %5 = vector.broadcast %4 : vector<1x32xf32> to vector<8x32xf32>
    %6 = arith.addf %3, %5 : vector<8x32xf32>
    %cst_5 = arith.constant 0.000000e+00 : f32
    %7 = vector.broadcast %cst_5 : f32 to vector<8x32xf32>
    %8 = arith.maximumf %6, %7 : vector<8x32xf32>
    %9 = arith.truncf %8 : vector<8x32xf32> to vector<8x32xbf16>
    %c0_6 = arith.constant 0 : index
    %c0_7 = arith.constant 0 : index
    %10 = vector.load %arg5[%c0_6, %c0_7] : memref<32x128xbf16, #tpu.memory_space<vmem>>, vector<32x128xbf16>
    %cst_8 = arith.constant dense<0.000000e+00> : vector<8x128xf32>
    %11 = tpu.matmul %9, %10, %cst_8 {dimension_numbers = #tpu.dot_dimension_numbers<[1], [0], [0], [1], [0, 0, 1, 1], [], []>} : vector<8x32xbf16>, vector<32x128xbf16>, vector<8x128xf32> -> vector<8x128xf32>
    %c0_9 = arith.constant 0 : index
    %c0_10 = arith.constant 0 : index
    %12 = vector.load %arg6[%c0_9, %c0_10] : memref<1x128xf32, #tpu.memory_space<vmem>>, vector<1x128xf32>
    %13 = vector.broadcast %12 : vector<1x128xf32> to vector<8x128xf32>
    %14 = arith.addf %11, %13 : vector<8x128xf32>
    %15 = vector.extract_strided_slice %14 {offsets = [0, 0], sizes = [8, 8], strides = [1, 1]} : vector<8x128xf32> to vector<8x8xf32>
    %16 = vector.extract_strided_slice %14 {offsets = [0, 8], sizes = [8, 8], strides = [1, 1]} : vector<8x128xf32> to vector<8x8xf32>
    %cst_11 = arith.constant 5.000000e-01 : f32
    %17 = vector.broadcast %cst_11 : f32 to vector<8x8xf32>
    %18 = arith.mulf %17, %16 : vector<8x8xf32>
    %19 = math.exp %18 : vector<8x8xf32>
    %c0_12 = arith.constant 0 : index
    %c0_13 = arith.constant 0 : index
    %20 = vector.load %arg2[%c0_12, %c0_13] : memref<8x8xf32, #tpu.memory_space<vmem>>, vector<8x8xf32>
    %21 = arith.mulf %19, %20 : vector<8x8xf32>
    %22 = arith.addf %15, %21 : vector<8x8xf32>
    %23 = arith.truncf %22 : vector<8x8xf32> to vector<8x8xbf16>
    %c0_14 = arith.constant 0 : index
    %c0_15 = arith.constant 0 : index
    %24 = vector.load %arg7[%c0_14, %c0_15] : memref<8x32xbf16, #tpu.memory_space<vmem>>, vector<8x32xbf16>
    %cst_16 = arith.constant dense<0.000000e+00> : vector<8x32xf32>
    %25 = tpu.matmul %23, %24, %cst_16 {dimension_numbers = #tpu.dot_dimension_numbers<[1], [0], [0], [1], [0, 0, 1, 1], [], []>} : vector<8x8xbf16>, vector<8x32xbf16>, vector<8x32xf32> -> vector<8x32xf32>
    %c0_17 = arith.constant 0 : index
    %c0_18 = arith.constant 0 : index
    %26 = vector.load %arg8[%c0_17, %c0_18] : memref<1x32xf32, #tpu.memory_space<vmem>>, vector<1x32xf32>
    %27 = vector.broadcast %26 : vector<1x32xf32> to vector<8x32xf32>
    %28 = arith.addf %25, %27 : vector<8x32xf32>
    %cst_19 = arith.constant 0.000000e+00 : f32
    %29 = vector.broadcast %cst_19 : f32 to vector<8x32xf32>
    %30 = arith.maximumf %28, %29 : vector<8x32xf32>
    %31 = arith.truncf %30 : vector<8x32xf32> to vector<8x32xbf16>
    %c0_20 = arith.constant 0 : index
    %c0_21 = arith.constant 0 : index
    %32 = vector.load %arg9[%c0_20, %c0_21] : memref<32x1024xbf16, #tpu.memory_space<vmem>>, vector<32x1024xbf16>
    %cst_22 = arith.constant dense<0.000000e+00> : vector<8x1024xf32>
    %33 = tpu.matmul %31, %32, %cst_22 {dimension_numbers = #tpu.dot_dimension_numbers<[1], [0], [0], [1], [0, 0, 1, 1], [], []>} : vector<8x32xbf16>, vector<32x1024xbf16>, vector<8x1024xf32> -> vector<8x1024xf32>
    %c0_23 = arith.constant 0 : index
    %c0_24 = arith.constant 0 : index
    %34 = vector.load %arg10[%c0_23, %c0_24] : memref<1x1024xf32, #tpu.memory_space<vmem>>, vector<1x1024xf32>
    %35 = vector.broadcast %34 : vector<1x1024xf32> to vector<8x1024xf32>
    %36 = arith.addf %33, %35 : vector<8x1024xf32>
    %37 = math.absf %36 : vector<8x1024xf32>
    %cst_25 = arith.constant 0.000000e+00 : f32
    %38 = vector.broadcast %cst_25 : f32 to vector<8x1024xf32>
    %39 = arith.subf %38, %37 : vector<8x1024xf32>
    %40 = math.exp %39 : vector<8x1024xf32>
    %cst_26 = arith.constant 1.000000e+00 : f32
    %41 = vector.broadcast %cst_26 : f32 to vector<8x1024xf32>
    %42 = arith.addf %41, %40 : vector<8x1024xf32>
    %43 = tpu.reciprocal %42 {approx = true} : vector<8x1024xf32> -> vector<8x1024xf32>
    %cst_27 = arith.constant 0.000000e+00 : f32
    %44 = vector.broadcast %cst_27 : f32 to vector<8x1024xf32>
    %45 = arith.cmpf oge, %36, %44 : vector<8x1024xf32>
    %46 = arith.mulf %40, %43 : vector<8x1024xf32>
    %47 = arith.select %45, %43, %46 : vector<8x1024xi1>, vector<8x1024xf32>
    %c0_28 = arith.constant 0 : index
    %c0_29 = arith.constant 0 : index
    %48 = vector.load %arg11[%c0_28, %c0_29] : memref<8x1024xf32, #tpu.memory_space<vmem>>, vector<8x1024xf32>
    tpu.vector_store %arg11[%c0_28, %c0_29], %47 {strides = array<i32>} : memref<8x1024xf32, #tpu.memory_space<vmem>>, vector<8x1024xf32>,
    %c0_30 = arith.constant 0 : index
    %c0_31 = arith.constant 0 : index
    %49 = vector.load %arg12[%c0_30, %c0_31] : memref<8x128xf32, #tpu.memory_space<vmem>>, vector<8x128xf32>
    tpu.vector_store %arg12[%c0_30, %c0_31], %14 {strides = array<i32>} : memref<8x128xf32, #tpu.memory_space<vmem>>, vector<8x128xf32>,
    return
  }
  func.func @transform_0(%arg0: i32) -> (i32, i32) {
    %c0_i32 = arith.constant 0 : i32
    %c0_i32_0 = arith.constant 0 : i32
    return %arg0, %c0_i32 : i32, i32
  }
  func.func @transform_1(%arg0: i32) -> (i32, i32) {
    %c0_i32 = arith.constant 0 : i32
    %c0_i32_0 = arith.constant 0 : i32
    return %arg0, %c0_i32 : i32, i32
  }
  func.func @transform_2(%arg0: i32) -> (i32, i32) {
    %c0_i32 = arith.constant 0 : i32
    %c0_i32_0 = arith.constant 0 : i32
    %c0_i32_1 = arith.constant 0 : i32
    return %c0_i32, %c0_i32_0 : i32, i32
  }
  func.func @transform_3(%arg0: i32) -> (i32, i32) {
    %c0_i32 = arith.constant 0 : i32
    %c0_i32_0 = arith.constant 0 : i32
    %c0_i32_1 = arith.constant 0 : i32
    return %c0_i32, %c0_i32_0 : i32, i32
  }
  func.func @transform_4(%arg0: i32) -> (i32, i32) {
    %c0_i32 = arith.constant 0 : i32
    %c0_i32_0 = arith.constant 0 : i32
    %c0_i32_1 = arith.constant 0 : i32
    return %c0_i32, %c0_i32_0 : i32, i32
  }
  func.func @transform_5(%arg0: i32) -> (i32, i32) {
    %c0_i32 = arith.constant 0 : i32
    %c0_i32_0 = arith.constant 0 : i32
    %c0_i32_1 = arith.constant 0 : i32
    return %c0_i32, %c0_i32_0 : i32, i32
  }
  func.func @transform_6(%arg0: i32) -> (i32, i32) {
    %c0_i32 = arith.constant 0 : i32
    %c0_i32_0 = arith.constant 0 : i32
    %c0_i32_1 = arith.constant 0 : i32
    return %c0_i32, %c0_i32_0 : i32, i32
  }
  func.func @transform_7(%arg0: i32) -> (i32, i32) {
    %c0_i32 = arith.constant 0 : i32
    %c0_i32_0 = arith.constant 0 : i32
    %c0_i32_1 = arith.constant 0 : i32
    return %c0_i32, %c0_i32_0 : i32, i32
  }
  func.func @transform_8(%arg0: i32) -> (i32, i32) {
    %c0_i32 = arith.constant 0 : i32
    %c0_i32_0 = arith.constant 0 : i32
    %c0_i32_1 = arith.constant 0 : i32
    return %c0_i32, %c0_i32_0 : i32, i32
  }
  func.func @transform_9(%arg0: i32) -> (i32, i32) {
    %c0_i32 = arith.constant 0 : i32
    %c0_i32_0 = arith.constant 0 : i32
    %c0_i32_1 = arith.constant 0 : i32
    return %c0_i32, %c0_i32_0 : i32, i32
  }
  func.func @transform_10(%arg0: i32) -> (i32, i32) {
    %c0_i32 = arith.constant 0 : i32
    %c0_i32_0 = arith.constant 0 : i32
    return %arg0, %c0_i32 : i32, i32
  }
  func.func @transform_11(%arg0: i32) -> (i32, i32) {
    %c0_i32 = arith.constant 0 : i32
    %c0_i32_0 = arith.constant 0 : i32
    return %arg0, %c0_i32 : i32, i32
  }
}

</mosaic_0001>

<llo_original>
// kernel: tpu_custom_call.1
$region0: #{tpu_custom_call.1}
  #allocation0 [shape = 'u32[]', space=smem, size = 0x4, offset = 0x4, fixed_abs, tag = 'smem constant byte address 0x4 - core index']
  #allocation1 [shape = 'u32[72,128]{1,0:T(1,128)}', space=vmem, size = 0x9000, scoped, tag = 'internal scratch']
  %s0 = inlined_call_operand.vmem [shape: f32[2,1024], index: 0, kind: input, shape index: {}]
  %s1 = inlined_call_operand.vmem [shape: f32[2,8], index: 1, kind: input, shape index: {}]
  %s2 = inlined_call_operand.vmem [shape: bf16[1024,32], index: 2, kind: input, shape index: {}]
  %s3 = inlined_call_operand.vmem [shape: f32[1,32], index: 3, kind: input, shape index: {}]
  %s4 = inlined_call_operand.vmem [shape: bf16[32,128], index: 4, kind: input, shape index: {}]
  %s5 = inlined_call_operand.vmem [shape: f32[1,128], index: 5, kind: input, shape index: {}]
  %s6 = inlined_call_operand.vmem [shape: bf16[8,32], index: 6, kind: input, shape index: {}]
  %s7 = inlined_call_operand.vmem [shape: f32[1,32], index: 7, kind: input, shape index: {}]
  %s8 = inlined_call_operand.vmem [shape: bf16[32,1024], index: 8, kind: input, shape index: {}]
  %s9 = inlined_call_operand.vmem [shape: f32[1,1024], index: 9, kind: input, shape index: {}]
  %s10 = inlined_call_operand.hbm [shape: f32[2,1024], index: 10, kind: output, shape index: {0}]
  %s11 = inlined_call_operand.hbm [shape: f32[2,128], index: 11, kind: output, shape index: {1}]
  %12 = xla_tuple %s10, %s11
  %s13 = sld [smem:[#allocation0]]
  $region58: #{tpu_custom_call.1} parent=0
    _
  %s15 = ssub.s32 1, %s13
  %s16 = scalar_select 0, %s15, %s13
  $region1: #{tpu_custom_call.1} parent=0
    #allocation2 [shape = 'u8[32768]{0}', space=vmem, size = 0x8000, scoped, tag = 'output window, operand 0, single buffered']
    #allocation3 [shape = 's32[1]{0}', space=sflag, size = 0x4, scoped, tag = 'scoped memory for tpu_custom_call.1']
    #allocation4 [shape = 'u8[4096]{0}', space=vmem, size = 0x1000, scoped, tag = 'output window, operand 1, single buffered']
    #allocation5 [shape = 's32[1]{0}', space=sflag, size = 0x4, scoped, tag = 'scoped memory for tpu_custom_call.1']
    %17 = vsyncpa [#allocation3], 0
    %18 = vsyncpa [#allocation5], 0
    // Predicated region
    $region2: #{tpu_custom_call.1} parent=1 // pred_check
      _
    $region3: #{tpu_custom_call.1} parent=1 // pred_check_branch
      %20 = sbr.rel (0) target = $region5
    $region4: #{tpu_custom_call.1} parent=1 // pred_region
      _
    $region5: #{tpu_custom_call.1} parent=1 // pred_fallthru
      _
    // Predicated region
    $region6: #{tpu_custom_call.1} parent=1 // pred_check
      _
    $region7: #{tpu_custom_call.1} parent=1 // pred_check_branch
      %22 = sbr.rel (0) target = $region9
    $region8: #{tpu_custom_call.1} parent=1 // pred_region
      _
    $region9: #{tpu_custom_call.1} parent=1 // pred_fallthru
      _
    // Predicated region
    $region10: #{tpu_custom_call.1} parent=1 // pred_check
      _
    $region11: #{tpu_custom_call.1} parent=1 // pred_check_branch
      %24 = sbr.rel (0) target = $region13
    $region12: #{tpu_custom_call.1} parent=1 // pred_region
      _
    $region13: #{tpu_custom_call.1} parent=1 // pred_fallthru
      _
    // Predicated region
    $region14: #{tpu_custom_call.1} parent=1 // pred_check
      _
    $region15: #{tpu_custom_call.1} parent=1 // pred_check_branch
      %26 = sbr.rel (0) target = $region17
    $region16: #{tpu_custom_call.1} parent=1 // pred_region
      _
    $region17: #{tpu_custom_call.1} parent=1 // pred_fallthru
      _
    // Predicated region
    $region18: #{tpu_custom_call.1} parent=1 // pred_check
      _
    $region19: #{tpu_custom_call.1} parent=1 // pred_check_branch
      %28 = sbr.rel (0) target = $region21
    $region20: #{tpu_custom_call.1} parent=1 // pred_region
      _
    $region21: #{tpu_custom_call.1} parent=1 // pred_fallthru
      _
    // Predicated region
    $region22: #{tpu_custom_call.1} parent=1 // pred_check
      _
    $region23: #{tpu_custom_call.1} parent=1 // pred_check_branch
      %30 = sbr.rel (0) target = $region25
    $region24: #{tpu_custom_call.1} parent=1 // pred_region
      _
    $region25: #{tpu_custom_call.1} parent=1 // pred_fallthru
      _
    // Predicated region
    $region26: #{tpu_custom_call.1} parent=1 // pred_check
      _
    $region27: #{tpu_custom_call.1} parent=1 // pred_check_branch
      %32 = sbr.rel (0) target = $region29
    $region28: #{tpu_custom_call.1} parent=1 // pred_region
      _
    $region29: #{tpu_custom_call.1} parent=1 // pred_fallthru
      _
    // Predicated region
    $region30: #{tpu_custom_call.1} parent=1 // pred_check
      _
    $region31: #{tpu_custom_call.1} parent=1 // pred_check_branch
      %34 = sbr.rel (0) target = $region33
    $region32: #{tpu_custom_call.1} parent=1 // pred_region
      _
    $region33: #{tpu_custom_call.1} parent=1 // pred_fallthru
      _
    // Predicated region
    $region34: #{tpu_custom_call.1} parent=1 // pred_check
      _
    $region35: #{tpu_custom_call.1} parent=1 // pred_check_branch
      %36 = sbr.rel (0) target = $region37
    $region36: #{tpu_custom_call.1} parent=1 // pred_region
      _
    $region37: #{tpu_custom_call.1} parent=1 // pred_fallthru
      _
    // Predicated region
    $region38: #{tpu_custom_call.1} parent=1 // pred_check
      _
    $region39: #{tpu_custom_call.1} parent=1 // pred_check_branch
      %38 = sbr.rel (0) target = $region41
    $region40: #{tpu_custom_call.1} parent=1 // pred_region
      _
    $region41: #{tpu_custom_call.1} parent=1 // pred_fallthru
      _
    %v40 = vld [vmem:[%s0] sm:$0xff]
    %v41 = vld [vmem:[%s0 + $0x8] sm:$0xff]
    %v42 = vld [vmem:[%s0 + $0x10] sm:$0xff]
    %v43 = vld [vmem:[%s0 + $0x18] sm:$0xff]
    %v44 = vld [vmem:[%s0 + $0x20] sm:$0xff]
    %v45 = vld [vmem:[%s0 + $0x28] sm:$0xff]
    %v46 = vld [vmem:[%s0 + $0x30] sm:$0xff]
    %v47 = vld [vmem:[%s0 + $0x38] sm:$0xff]
    %56 = vst [vmem:[#allocation1] ss:$4 sm:$0xff] %v40
    %s57 = scalar_lea.vmem [#allocation1], 1
    %58 = vst [vmem:[%s57] ss:$4 sm:$0xff] %v42
    %s59 = scalar_lea.vmem [#allocation1], 2
    %60 = vst [vmem:[%s59] ss:$4 sm:$0xff] %v44
    %s61 = scalar_lea.vmem [#allocation1], 3
    %62 = vst [vmem:[%s61] ss:$4 sm:$0xff] %v46
    %s63 = scalar_lea.vmem [#allocation1], 32
    %64 = vst [vmem:[%s63] ss:$4 sm:$0xff] %v41
    %s65 = scalar_lea.vmem [#allocation1], 33
    %66 = vst [vmem:[%s65] ss:$4 sm:$0xff] %v43
    %s67 = scalar_lea.vmem [#allocation1], 34
    %68 = vst [vmem:[%s67] ss:$4 sm:$0xff] %v45
    %s69 = scalar_lea.vmem [#allocation1], 35
    %70 = vst [vmem:[%s69] ss:$4 sm:$0xff] %v47
    %v71 = vld.sshfl [vmem:[#allocation1] sm:$0xff pattern:$0x73625140]
    %v72 = vld.sshfl [vmem:[#allocation1 + $0x8] sm:$0xff pattern:$0x73625140]
    %v73 = vld.sshfl [vmem:[#allocation1 + $0x10] sm:$0xff pattern:$0x73625140]
    %v74 = vld.sshfl [vmem:[#allocation1 + $0x18] sm:$0xff pattern:$0x73625140]
    %v75 = vld.sshfl [vmem:[#allocation1 + $0x20] sm:$0xff pattern:$0x73625140]
    %v76 = vld.sshfl [vmem:[#allocation1 + $0x28] sm:$0xff pattern:$0x73625140]
    %v77 = vld.sshfl [vmem:[#allocation1 + $0x30] sm:$0xff pattern:$0x73625140]
    %v78 = vld.sshfl [vmem:[#allocation1 + $0x38] sm:$0xff pattern:$0x73625140]
    %v87 = vpack.c.bf16 %v71, %v71
    %v88 = vpack.c.bf16 %v72, %v72
    %v89 = vpack.c.bf16 %v73, %v73
    %v90 = vpack.c.bf16 %v74, %v74
    %v91 = vpack.c.bf16 %v75, %v75
    %v92 = vpack.c.bf16 %v76, %v76
    %v93 = vpack.c.bf16 %v77, %v77
    %v94 = vpack.c.bf16 %v78, %v78
    %v95 = vld [vmem:[%s2] sm:$0xf]
    %v96 = vld [vmem:[%s2 + $0x4] sm:$0xf]
    %v97 = vld [vmem:[%s2 + $0x8] sm:$0xf]
    %v98 = vld [vmem:[%s2 + $0xc] sm:$0xf]
    %v99 = vld [vmem:[%s2 + $0x10] sm:$0xf]
    %v100 = vld [vmem:[%s2 + $0x14] sm:$0xf]
    %v101 = vld [vmem:[%s2 + $0x18] sm:$0xf]
    %v102 = vld [vmem:[%s2 + $0x1c] sm:$0xf]
    %v103 = vld [vmem:[%s2 + $0x20] sm:$0xf]
    %v104 = vld [vmem:[%s2 + $0x24] sm:$0xf]
    %v105 = vld [vmem:[%s2 + $0x28] sm:$0xf]
    %v106 = vld [vmem:[%s2 + $0x2c] sm:$0xf]
    %v107 = vld [vmem:[%s2 + $0x30] sm:$0xf]
    %v108 = vld [vmem:[%s2 + $0x34] sm:$0xf]
    %v109 = vld [vmem:[%s2 + $0x38] sm:$0xf]
    %v110 = vld [vmem:[%s2 + $0x3c] sm:$0xf]
    %v111 = vld [vmem:[%s2 + $0x40] sm:$0xf]
    %v112 = vld [vmem:[%s2 + $0x44] sm:$0xf]
    %v113 = vld [vmem:[%s2 + $0x48] sm:$0xf]
    %v114 = vld [vmem:[%s2 + $0x4c] sm:$0xf]
    %v115 = vld [vmem:[%s2 + $0x50] sm:$0xf]
    %v116 = vld [vmem:[%s2 + $0x54] sm:$0xf]
    %v117 = vld [vmem:[%s2 + $0x58] sm:$0xf]
    %v118 = vld [vmem:[%s2 + $0x5c] sm:$0xf]
    %v119 = vld [vmem:[%s2 + $0x60] sm:$0xf]
    %v120 = vld [vmem:[%s2 + $0x64] sm:$0xf]
    %v121 = vld [vmem:[%s2 + $0x68] sm:$0xf]
    %v122 = vld [vmem:[%s2 + $0x6c] sm:$0xf]
    %v123 = vld [vmem:[%s2 + $0x70] sm:$0xf]
    %v124 = vld [vmem:[%s2 + $0x74] sm:$0xf]
    %v125 = vld [vmem:[%s2 + $0x78] sm:$0xf]
    %v126 = vld [vmem:[%s2 + $0x7c] sm:$0xf]
    %v127 = vld [vmem:[%s2 + $0x80] sm:$0xf]
    %v128 = vld [vmem:[%s2 + $0x84] sm:$0xf]
    %v129 = vld [vmem:[%s2 + $0x88] sm:$0xf]
    %v130 = vld [vmem:[%s2 + $0x8c] sm:$0xf]
    %v131 = vld [vmem:[%s2 + $0x90] sm:$0xf]
    %v132 = vld [vmem:[%s2 + $0x94] sm:$0xf]
    %v133 = vld [vmem:[%s2 + $0x98] sm:$0xf]
    %v134 = vld [vmem:[%s2 + $0x9c] sm:$0xf]
    %v135 = vld [vmem:[%s2 + $0xa0] sm:$0xf]
    %v136 = vld [vmem:[%s2 + $0xa4] sm:$0xf]
    %v137 = vld [vmem:[%s2 + $0xa8] sm:$0xf]
    %v138 = vld [vmem:[%s2 + $0xac] sm:$0xf]
    %v139 = vld [vmem:[%s2 + $0xb0] sm:$0xf]
    %v140 = vld [vmem:[%s2 + $0xb4] sm:$0xf]
    %v141 = vld [vmem:[%s2 + $0xb8] sm:$0xf]
    %v142 = vld [vmem:[%s2 + $0xbc] sm:$0xf]
    %v143 = vld [vmem:[%s2 + $0xc0] sm:$0xf]
    %v144 = vld [vmem:[%s2 + $0xc4] sm:$0xf]
    %v145 = vld [vmem:[%s2 + $0xc8] sm:$0xf]
    %v146 = vld [vmem:[%s2 + $0xcc] sm:$0xf]
    %v147 = vld [vmem:[%s2 + $0xd0] sm:$0xf]
    %v148 = vld [vmem:[%s2 + $0xd4] sm:$0xf]
    %v149 = vld [vmem:[%s2 + $0xd8] sm:$0xf]
    %v150 = vld [vmem:[%s2 + $0xdc] sm:$0xf]
    %v151 = vld [vmem:[%s2 + $0xe0] sm:$0xf]
    %v152 = vld [vmem:[%s2 + $0xe4] sm:$0xf]
    %v153 = vld [vmem:[%s2 + $0xe8] sm:$0xf]
    %v154 = vld [vmem:[%s2 + $0xec] sm:$0xf]
    %v155 = vld [vmem:[%s2 + $0xf0] sm:$0xf]
    %v156 = vld [vmem:[%s2 + $0xf4] sm:$0xf]
    %v157 = vld [vmem:[%s2 + $0xf8] sm:$0xf]
    %v158 = vld [vmem:[%s2 + $0xfc] sm:$0xf]
    %v159 = vld [vmem:[%s2 + $0x100] sm:$0xf]
    %v160 = vld [vmem:[%s2 + $0x104] sm:$0xf]
    %v161 = vld [vmem:[%s2 + $0x108] sm:$0xf]
    %v162 = vld [vmem:[%s2 + $0x10c] sm:$0xf]
    %v163 = vld [vmem:[%s2 + $0x110] sm:$0xf]
    %v164 = vld [vmem:[%s2 + $0x114] sm:$0xf]
    %v165 = vld [vmem:[%s2 + $0x118] sm:$0xf]
    %v166 = vld [vmem:[%s2 + $0x11c] sm:$0xf]
    %v167 = vld [vmem:[%s2 + $0x120] sm:$0xf]
    %v168 = vld [vmem:[%s2 + $0x124] sm:$0xf]
    %v169 = vld [vmem:[%s2 + $0x128] sm:$0xf]
    %v170 = vld [vmem:[%s2 + $0x12c] sm:$0xf]
    %v171 = vld [vmem:[%s2 + $0x130] sm:$0xf]
    %v172 = vld [vmem:[%s2 + $0x134] sm:$0xf]
    %v173 = vld [vmem:[%s2 + $0x138] sm:$0xf]
    %v174 = vld [vmem:[%s2 + $0x13c] sm:$0xf]
    %v175 = vld [vmem:[%s2 + $0x140] sm:$0xf]
    %v176 = vld [vmem:[%s2 + $0x144] sm:$0xf]
    %v177 = vld [vmem:[%s2 + $0x148] sm:$0xf]
    %v178 = vld [vmem:[%s2 + $0x14c] sm:$0xf]
    %v179 = vld [vmem:[%s2 + $0x150] sm:$0xf]
    %v180 = vld [vmem:[%s2 + $0x154] sm:$0xf]
    %v181 = vld [vmem:[%s2 + $0x158] sm:$0xf]
    %v182 = vld [vmem:[%s2 + $0x15c] sm:$0xf]
    %v183 = vld [vmem:[%s2 + $0x160] sm:$0xf]
    %v184 = vld [vmem:[%s2 + $0x164] sm:$0xf]
    %v185 = vld [vmem:[%s2 + $0x168] sm:$0xf]
    %v186 = vld [vmem:[%s2 + $0x16c] sm:$0xf]
    %v187 = vld [vmem:[%s2 + $0x170] sm:$0xf]
    %v188 = vld [vmem:[%s2 + $0x174] sm:$0xf]
    %v189 = vld [vmem:[%s2 + $0x178] sm:$0xf]
    %v190 = vld [vmem:[%s2 + $0x17c] sm:$0xf]
    %v191 = vld [vmem:[%s2 + $0x180] sm:$0xf]
    %v192 = vld [vmem:[%s2 + $0x184] sm:$0xf]
    %v193 = vld [vmem:[%s2 + $0x188] sm:$0xf]
    %v194 = vld [vmem:[%s2 + $0x18c] sm:$0xf]
    %v195 = vld [vmem:[%s2 + $0x190] sm:$0xf]
    %v196 = vld [vmem:[%s2 + $0x194] sm:$0xf]
    %v197 = vld [vmem:[%s2 + $0x198] sm:$0xf]
    %v198 = vld [vmem:[%s2 + $0x19c] sm:$0xf]
    %v199 = vld [vmem:[%s2 + $0x1a0] sm:$0xf]
    %v200 = vld [vmem:[%s2 + $0x1a4] sm:$0xf]
    %v201 = vld [vmem:[%s2 + $0x1a8] sm:$0xf]
    %v202 = vld [vmem:[%s2 + $0x1ac] sm:$0xf]
    %v203 = vld [vmem:[%s2 + $0x1b0] sm:$0xf]
    %v204 = vld [vmem:[%s2 + $0x1b4] sm:$0xf]
    %v205 = vld [vmem:[%s2 + $0x1b8] sm:$0xf]
    %v206 = vld [vmem:[%s2 + $0x1bc] sm:$0xf]
    %v207 = vld [vmem:[%s2 + $0x1c0] sm:$0xf]
    %v208 = vld [vmem:[%s2 + $0x1c4] sm:$0xf]
    %v209 = vld [vmem:[%s2 + $0x1c8] sm:$0xf]
    %v210 = vld [vmem:[%s2 + $0x1cc] sm:$0xf]
    %v211 = vld [vmem:[%s2 + $0x1d0] sm:$0xf]
    %v212 = vld [vmem:[%s2 + $0x1d4] sm:$0xf]
    %v213 = vld [vmem:[%s2 + $0x1d8] sm:$0xf]
    %v214 = vld [vmem:[%s2 + $0x1dc] sm:$0xf]
    %v215 = vld [vmem:[%s2 + $0x1e0] sm:$0xf]
    %v216 = vld [vmem:[%s2 + $0x1e4] sm:$0xf]
    %v217 = vld [vmem:[%s2 + $0x1e8] sm:$0xf]
    %v218 = vld [vmem:[%s2 + $0x1ec] sm:$0xf]
    %v219 = vld [vmem:[%s2 + $0x1f0] sm:$0xf]
    %v220 = vld [vmem:[%s2 + $0x1f4] sm:$0xf]
    %v221 = vld [vmem:[%s2 + $0x1f8] sm:$0xf]
    %v222 = vld [vmem:[%s2 + $0x1fc] sm:$0xf]
    %v223 = vld [vmem:[%s3] sm:$0x1]
    %v225 = vperm.slane %v223, 0
    %v355 = vunpack.c.l.b16 %v95
    %v356 = vunpack.c.l.b16 %v96
    %v357 = vunpack.c.l.b16 %v97
    %v358 = vunpack.c.l.b16 %v98
    %v359 = vunpack.c.l.b16 %v99
    %v360 = vunpack.c.l.b16 %v100
    %v361 = vunpack.c.l.b16 %v101
    %v362 = vunpack.c.l.b16 %v102
    %v363 = vunpack.c.l.b16 %v103
    %v364 = vunpack.c.l.b16 %v104
    %v365 = vunpack.c.l.b16 %v105
    %v366 = vunpack.c.l.b16 %v106
    %v367 = vunpack.c.l.b16 %v107
    %v368 = vunpack.c.l.b16 %v108
    %v369 = vunpack.c.l.b16 %v109
    %v370 = vunpack.c.l.b16 %v110
    %v371 = vunpack.c.l.b16 %v111
    %v372 = vunpack.c.l.b16 %v112
    %v373 = vunpack.c.l.b16 %v113
    %v374 = vunpack.c.l.b16 %v114
    %v375 = vunpack.c.l.b16 %v115
    %v376 = vunpack.c.l.b16 %v116
    %v377 = vunpack.c.l.b16 %v117
    %v378 = vunpack.c.l.b16 %v118
    %v379 = vunpack.c.l.b16 %v119
    %v380 = vunpack.c.l.b16 %v120
    %v381 = vunpack.c.l.b16 %v121
    %v382 = vunpack.c.l.b16 %v122
    %v383 = vunpack.c.l.b16 %v123
    %v384 = vunpack.c.l.b16 %v124
    %v385 = vunpack.c.l.b16 %v125
    %v386 = vunpack.c.l.b16 %v126
    %v387 = vunpack.c.l.b16 %v127
    %v388 = vunpack.c.l.b16 %v128
    %v389 = vunpack.c.l.b16 %v129
    %v390 = vunpack.c.l.b16 %v130
    %v391 = vunpack.c.l.b16 %v131
    %v392 = vunpack.c.l.b16 %v132
    %v393 = vunpack.c.l.b16 %v133
    %v394 = vunpack.c.l.b16 %v134
    %v395 = vunpack.c.l.b16 %v135
    %v396 = vunpack.c.l.b16 %v136
    %v397 = vunpack.c.l.b16 %v137
    %v398 = vunpack.c.l.b16 %v138
    %v399 = vunpack.c.l.b16 %v139
    %v400 = vunpack.c.l.b16 %v140
    %v401 = vunpack.c.l.b16 %v141
    %v402 = vunpack.c.l.b16 %v142
    %v403 = vunpack.c.l.b16 %v143
    %v404 = vunpack.c.l.b16 %v144
    %v405 = vunpack.c.l.b16 %v145
    %v406 = vunpack.c.l.b16 %v146
    %v407 = vunpack.c.l.b16 %v147
    %v408 = vunpack.c.l.b16 %v148
    %v409 = vunpack.c.l.b16 %v149
    %v410 = vunpack.c.l.b16 %v150
    %v411 = vunpack.c.l.b16 %v151
    %v412 = vunpack.c.l.b16 %v152
    %v413 = vunpack.c.l.b16 %v153
    %v414 = vunpack.c.l.b16 %v154
    %v415 = vunpack.c.l.b16 %v155
    %v416 = vunpack.c.l.b16 %v156
    %v417 = vunpack.c.l.b16 %v157
    %v418 = vunpack.c.l.b16 %v158
    %v419 = vunpack.c.l.b16 %v159
    %v420 = vunpack.c.l.b16 %v160
    %v421 = vunpack.c.l.b16 %v161
    %v422 = vunpack.c.l.b16 %v162
    %v423 = vunpack.c.l.b16 %v163
    %v424 = vunpack.c.l.b16 %v164
    %v425 = vunpack.c.l.b16 %v165
    %v426 = vunpack.c.l.b16 %v166
    %v427 = vunpack.c.l.b16 %v167
    %v428 = vunpack.c.l.b16 %v168
    %v429 = vunpack.c.l.b16 %v169
    %v430 = vunpack.c.l.b16 %v170
    %v431 = vunpack.c.l.b16 %v171
    %v432 = vunpack.c.l.b16 %v172
    %v433 = vunpack.c.l.b16 %v173
    %v434 = vunpack.c.l.b16 %v174
    %v435 = vunpack.c.l.b16 %v175
    %v436 = vunpack.c.l.b16 %v176
    %v437 = vunpack.c.l.b16 %v177
    %v438 = vunpack.c.l.b16 %v178
    %v439 = vunpack.c.l.b16 %v179
    %v440 = vunpack.c.l.b16 %v180
    %v441 = vunpack.c.l.b16 %v181
    %v442 = vunpack.c.l.b16 %v182
    %v443 = vunpack.c.l.b16 %v183
    %v444 = vunpack.c.l.b16 %v184
    %v445 = vunpack.c.l.b16 %v185
    %v446 = vunpack.c.l.b16 %v186
    %v447 = vunpack.c.l.b16 %v187
    %v448 = vunpack.c.l.b16 %v188
    %v449 = vunpack.c.l.b16 %v189
    %v450 = vunpack.c.l.b16 %v190
    %v451 = vunpack.c.l.b16 %v191
    %v452 = vunpack.c.l.b16 %v192
    %v453 = vunpack.c.l.b16 %v193
    %v454 = vunpack.c.l.b16 %v194
    %v455 = vunpack.c.l.b16 %v195
    %v456 = vunpack.c.l.b16 %v196
    %v457 = vunpack.c.l.b16 %v197
    %v458 = vunpack.c.l.b16 %v198
    %v459 = vunpack.c.l.b16 %v199
    %v460 = vunpack.c.l.b16 %v200
    %v461 = vunpack.c.l.b16 %v201
    %v462 = vunpack.c.l.b16 %v202
    %v463 = vunpack.c.l.b16 %v203
    %v464 = vunpack.c.l.b16 %v204
    %v465 = vunpack.c.l.b16 %v205
    %v466 = vunpack.c.l.b16 %v206
    %v467 = vunpack.c.l.b16 %v207
    %v468 = vunpack.c.l.b16 %v208
    %v469 = vunpack.c.l.b16 %v209
    %v470 = vunpack.c.l.b16 %v210
    %v471 = vunpack.c.l.b16 %v211
    %v472 = vunpack.c.l.b16 %v212
    %v473 = vunpack.c.l.b16 %v213
    %v474 = vunpack.c.l.b16 %v214
    %v475 = vunpack.c.l.b16 %v215
    %v476 = vunpack.c.l.b16 %v216
    %v477 = vunpack.c.l.b16 %v217
    %v478 = vunpack.c.l.b16 %v218
    %v479 = vunpack.c.l.b16 %v219
    %v480 = vunpack.c.l.b16 %v220
    %v481 = vunpack.c.l.b16 %v221
    %v482 = vunpack.c.l.b16 %v222
    %v483 = vpack.c.b16 %v356, %v355
    %v484 = vpack.c.b16 %v358, %v357
    %v485 = vpack.c.b16 %v360, %v359
    %v486 = vpack.c.b16 %v362, %v361
    %v487 = vpack.c.b16 %v364, %v363
    %v488 = vpack.c.b16 %v366, %v365
    %v489 = vpack.c.b16 %v368, %v367
    %v490 = vpack.c.b16 %v370, %v369
    %v491 = vpack.c.b16 %v372, %v371
    %v492 = vpack.c.b16 %v374, %v373
    %v493 = vpack.c.b16 %v376, %v375
    %v494 = vpack.c.b16 %v378, %v377
    %v495 = vpack.c.b16 %v380, %v379
    %v496 = vpack.c.b16 %v382, %v381
    %v497 = vpack.c.b16 %v384, %v383
    %v498 = vpack.c.b16 %v386, %v385
    %v499 = vpack.c.b16 %v388, %v387
    %v500 = vpack.c.b16 %v390, %v389
    %v501 = vpack.c.b16 %v392, %v391
    %v502 = vpack.c.b16 %v394, %v393
    %v503 = vpack.c.b16 %v396, %v395
    %v504 = vpack.c.b16 %v398, %v397
    %v505 = vpack.c.b16 %v400, %v399
    %v506 = vpack.c.b16 %v402, %v401
    %v507 = vpack.c.b16 %v404, %v403
    %v508 = vpack.c.b16 %v406, %v405
    %v509 = vpack.c.b16 %v408, %v407
    %v510 = vpack.c.b16 %v410, %v409
    %v511 = vpack.c.b16 %v412, %v411
    %v512 = vpack.c.b16 %v414, %v413
    %v513 = vpack.c.b16 %v416, %v415
    %v514 = vpack.c.b16 %v418, %v417
    %v515 = vpack.c.b16 %v420, %v419
    %v516 = vpack.c.b16 %v422, %v421
    %v517 = vpack.c.b16 %v424, %v423
    %v518 = vpack.c.b16 %v426, %v425
    %v519 = vpack.c.b16 %v428, %v427
    %v520 = vpack.c.b16 %v430, %v429
    %v521 = vpack.c.b16 %v432, %v431
    %v522 = vpack.c.b16 %v434, %v433
    %v523 = vpack.c.b16 %v436, %v435
    %v524 = vpack.c.b16 %v438, %v437
    %v525 = vpack.c.b16 %v440, %v439
    %v526 = vpack.c.b16 %v442, %v441
    %v527 = vpack.c.b16 %v444, %v443
    %v528 = vpack.c.b16 %v446, %v445
    %v529 = vpack.c.b16 %v448, %v447
    %v530 = vpack.c.b16 %v450, %v449
    %v531 = vpack.c.b16 %v452, %v451
    %v532 = vpack.c.b16 %v454, %v453
    %v533 = vpack.c.b16 %v456, %v455
    %v534 = vpack.c.b16 %v458, %v457
    %v535 = vpack.c.b16 %v460, %v459
    %v536 = vpack.c.b16 %v462, %v461
    %v537 = vpack.c.b16 %v464, %v463
    %v538 = vpack.c.b16 %v466, %v465
    %v539 = vpack.c.b16 %v468, %v467
    %v540 = vpack.c.b16 %v470, %v469
    %v541 = vpack.c.b16 %v472, %v471
    %v542 = vpack.c.b16 %v474, %v473
    %v543 = vpack.c.b16 %v476, %v475
    %v544 = vpack.c.b16 %v478, %v477
    %v545 = vpack.c.b16 %v480, %v479
    %v546 = vpack.c.b16 %v482, %v481
    %611 = vmatpush.bf16.msra.mxu0 %v490
    %612 = vmatpush.bf16.msra.mxu0 %v489
    %613 = vmatpush.bf16.msra.mxu0 %v488
    %614 = vmatpush.bf16.msra.mxu0 %v487
    %615 = vmatpush.bf16.msra.mxu0 %v486
    %616 = vmatpush.bf16.msra.mxu0 %v485
    %617 = vmatpush.bf16.msra.mxu0 %v484
    %618 = vmatpush.bf16.msra.mxu0 %v483
    %619 = vmatmul.bf16.gmra.mxu0 %v87
    %v620 = vpop.f32.mrf.mxu0
    %v621 = vadd.f32 %v225, %v620
    %v622 = vpop.f32.mrf.mxu0
    %623 = vdwg.mxu0
    %624 = vmatpush.bf16.msra.mxu0 %v498
    %625 = vmatpush.bf16.msra.mxu0 %v497
    %626 = vmatpush.bf16.msra.mxu0 %v496
    %627 = vmatpush.bf16.msra.mxu0 %v495
    %628 = vmatpush.bf16.msra.mxu0 %v494
    %629 = vmatpush.bf16.msra.mxu0 %v493
    %630 = vmatpush.bf16.msra.mxu0 %v492
    %631 = vmatpush.bf16.msra.mxu0 %v491
    %632 = vmatmul.bf16.gmra.mxu0 %v88
    %v633 = vpop.f32.mrf.mxu0
    %v634 = vadd.f32 %v621, %v633
    %v635 = vpop.f32.mrf.mxu0
    %636 = vdwg.mxu0
    %637 = vmatpush.bf16.msra.mxu0 %v506
    %638 = vmatpush.bf16.msra.mxu0 %v505
    %639 = vmatpush.bf16.msra.mxu0 %v504
    %640 = vmatpush.bf16.msra.mxu0 %v503
    %641 = vmatpush.bf16.msra.mxu0 %v502
    %642 = vmatpush.bf16.msra.mxu0 %v501
    %643 = vmatpush.bf16.msra.mxu0 %v500
    %644 = vmatpush.bf16.msra.mxu0 %v499
    %645 = vmatmul.bf16.gmra.mxu0 %v89
    %v646 = vpop.f32.mrf.mxu0
    %v647 = vadd.f32 %v634, %v646
    %v648 = vpop.f32.mrf.mxu0
    %649 = vdwg.mxu0
    %650 = vmatpush.bf16.msra.mxu0 %v514
    %651 = vmatpush.bf16.msra.mxu0 %v513
    %652 = vmatpush.bf16.msra.mxu0 %v512
    %653 = vmatpush.bf16.msra.mxu0 %v511
    %654 = vmatpush.bf16.msra.mxu0 %v510
    %655 = vmatpush.bf16.msra.mxu0 %v509
    %656 = vmatpush.bf16.msra.mxu0 %v508
    %657 = vmatpush.bf16.msra.mxu0 %v507
    %658 = vmatmul.bf16.gmra.mxu0 %v90
    %v659 = vpop.f32.mrf.mxu0
    %v660 = vadd.f32 %v647, %v659
    %v661 = vpop.f32.mrf.mxu0
    %662 = vdwg.mxu0
    %663 = vmatpush.bf16.msra.mxu0 %v522
    %664 = vmatpush.bf16.msra.mxu0 %v521
    %665 = vmatpush.bf16.msra.mxu0 %v520
    %666 = vmatpush.bf16.msra.mxu0 %v519
    %667 = vmatpush.bf16.msra.mxu0 %v518
    %668 = vmatpush.bf16.msra.mxu0 %v517
    %669 = vmatpush.bf16.msra.mxu0 %v516
    %670 = vmatpush.bf16.msra.mxu0 %v515
    %671 = vmatmul.bf16.gmra.mxu0 %v91
    %v672 = vpop.f32.mrf.mxu0
    %v673 = vadd.f32 %v660, %v672
    %v674 = vpop.f32.mrf.mxu0
    %675 = vdwg.mxu0
    %676 = vmatpush.bf16.msra.mxu0 %v530
    %677 = vmatpush.bf16.msra.mxu0 %v529
    %678 = vmatpush.bf16.msra.mxu0 %v528
    %679 = vmatpush.bf16.msra.mxu0 %v527
    %680 = vmatpush.bf16.msra.mxu0 %v526
    %681 = vmatpush.bf16.msra.mxu0 %v525
    %682 = vmatpush.bf16.msra.mxu0 %v524
    %683 = vmatpush.bf16.msra.mxu0 %v523
    %684 = vmatmul.bf16.gmra.mxu0 %v92
    %v685 = vpop.f32.mrf.mxu0
    %v686 = vadd.f32 %v673, %v685
    %v687 = vpop.f32.mrf.mxu0
    %688 = vdwg.mxu0
    %689 = vmatpush.bf16.msra.mxu0 %v538
    %690 = vmatpush.bf16.msra.mxu0 %v537
    %691 = vmatpush.bf16.msra.mxu0 %v536
    %692 = vmatpush.bf16.msra.mxu0 %v535
    %693 = vmatpush.bf16.msra.mxu0 %v534
    %694 = vmatpush.bf16.msra.mxu0 %v533
    %695 = vmatpush.bf16.msra.mxu0 %v532
    %696 = vmatpush.bf16.msra.mxu0 %v531
    %697 = vmatmul.bf16.gmra.mxu0 %v93
    %v698 = vpop.f32.mrf.mxu0
    %v699 = vadd.f32 %v686, %v698
    %v700 = vpop.f32.mrf.mxu0
    %701 = vdwg.mxu0
    %702 = vmatpush.bf16.msra.mxu0 %v546
    %703 = vmatpush.bf16.msra.mxu0 %v545
    %704 = vmatpush.bf16.msra.mxu0 %v544
    %705 = vmatpush.bf16.msra.mxu0 %v543
    %706 = vmatpush.bf16.msra.mxu0 %v542
    %707 = vmatpush.bf16.msra.mxu0 %v541
    %708 = vmatpush.bf16.msra.mxu0 %v540
    %709 = vmatpush.bf16.msra.mxu0 %v539
    %710 = vmatmul.bf16.gmra.mxu0 %v94
    %v711 = vpop.f32.mrf.mxu0
    %v712 = vadd.f32 %v699, %v711
    %v713 = vpop.f32.mrf.mxu0
    %714 = vdwg.mxu0
    %v715 = vmax.f32 %v712, 0.0
    %v716 = vpack.c.bf16 %v715, %v715
    %v717 = vld [vmem:[%s4] sm:$0xf]
    %v718 = vld [vmem:[%s4 + $0x4] sm:$0xf]
    %v719 = vld [vmem:[%s4 + $0x8] sm:$0xf]
    %v720 = vld [vmem:[%s4 + $0xc] sm:$0xf]
    %v721 = vld [vmem:[%s5] sm:$0x1]
    %v723 = vperm.slane %v721, 0
    %v729 = vunpack.c.l.b16 %v717
    %v730 = vunpack.c.l.b16 %v718
    %v731 = vunpack.c.l.b16 %v719
    %v732 = vunpack.c.l.b16 %v720
    %v733 = vpack.c.b16 %v730, %v729
    %v734 = vpack.c.b16 %v732, %v731
    %vm737 = vcmask 261120
    %v739 = vsel %vm737, %v716, 0
    %741 = vmatpush.bf16.msra.mxu0 0
    %742 = vmatpush.bf16.msra.mxu0 0
    %743 = vmatpush.bf16.msra.mxu0 0
    %744 = vmatpush.bf16.msra.mxu0 0
    %745 = vmatpush.bf16.msra.mxu0 0
    %746 = vmatpush.bf16.msra.mxu0 0
    %747 = vmatpush.bf16.msra.mxu0 %v734
    %748 = vmatpush.bf16.msra.mxu0 %v733
    %749 = vmatmul.bf16.gmra.mxu0 %v739
    %v750 = vpop.f32.mrf.mxu0
    %v751 = vadd.f32 %v723, %v750
    %v752 = vpop.f32.mrf.mxu0
    %753 = vdwg.mxu0
    %v754 = vmul.f32 %v751, 0.5
    %v755 = vmul.f32 %v754, 1.442695
    %v756 = vpow.pop %v755
    %v757 = vld [vmem:[%s1] sm:$0xff]
    %759 = vrot.lane.b32.xlu0 %v757, 8
    %v760 = vpop.permute.xlu0 %759
    %v762 = vmul.f32 %v756, %v760
    %764 = vrot.lane.b32.xlu0 %v762, 120
    %v765 = vpop.permute.xlu0 %764
    %v767 = vadd.f32 %v751, %v765
    %v768 = vpack.c.bf16 %v767, %v767
    %v769 = vld [vmem:[%s6] sm:$0xf]
    %v770 = vld [vmem:[%s7] sm:$0x1]
    %v772 = vperm.slane %v770, 0
    %vm774 = vcmask 64512
    %v776 = vsel %vm774, %v768, 0
    %vm778 = vcmask 1043456
    %v780 = vsel %vm778, %v769, 0
    %782 = vmatpush.bf16.msra.mxu0 0
    %783 = vmatpush.bf16.msra.mxu0 0
    %784 = vmatpush.bf16.msra.mxu0 0
    %785 = vmatpush.bf16.msra.mxu0 0
    %786 = vmatpush.bf16.msra.mxu0 0
    %787 = vmatpush.bf16.msra.mxu0 0
    %788 = vmatpush.bf16.msra.mxu0 0
    %789 = vmatpush.bf16.msra.mxu0 %v780
    %790 = vmatmul.bf16.gmra.mxu0 %v776
    %v791 = vpop.f32.mrf.mxu0
    %v792 = vadd.f32 %v772, %v791
    %v793 = vpop.f32.mrf.mxu0
    %794 = vdwg.mxu0
    %v795 = vmax.f32 %v792, 0.0
    %v796 = vpack.c.bf16 %v795, %v795
    %v797 = vld [vmem:[%s8] sm:$0xff]
    %v798 = vld [vmem:[%s8 + $0x8] sm:$0xff]
    %v799 = vld [vmem:[%s8 + $0x10] sm:$0xff]
    %v800 = vld [vmem:[%s8 + $0x18] sm:$0xff]
    %v801 = vld [vmem:[%s8 + $0x20] sm:$0xff]
    %v802 = vld [vmem:[%s8 + $0x28] sm:$0xff]
    %v803 = vld [vmem:[%s8 + $0x30] sm:$0xff]
    %v804 = vld [vmem:[%s8 + $0x38] sm:$0xff]
    %v805 = vld [vmem:[%s8 + $0x40] sm:$0xff]
    %v806 = vld [vmem:[%s8 + $0x48] sm:$0xff]
    %v807 = vld [vmem:[%s8 + $0x50] sm:$0xff]
    %v808 = vld [vmem:[%s8 + $0x58] sm:$0xff]
    %v809 = vld [vmem:[%s8 + $0x60] sm:$0xff]
    %v810 = vld [vmem:[%s8 + $0x68] sm:$0xff]
    %v811 = vld [vmem:[%s8 + $0x70] sm:$0xff]
    %v812 = vld [vmem:[%s8 + $0x78] sm:$0xff]
    %v813 = vld [vmem:[%s9] sm:$0xff]
    %v815 = vperm.slane %v813, 0
    %v816 = vperm.slane %v813, 1
    %v817 = vperm.slane %v813, 2
    %v818 = vperm.slane %v813, 3
    %v819 = vperm.slane %v813, 4
    %v820 = vperm.slane %v813, 5
    %v821 = vperm.slane %v813, 6
    %v822 = vperm.slane %v813, 7
    %v847 = vunpack.c.l.b16 %v797
    %v848 = vunpack.c.h.b16 %v797
    %v849 = vunpack.c.l.b16 %v798
    %v850 = vunpack.c.h.b16 %v798
    %v851 = vunpack.c.l.b16 %v799
    %v852 = vunpack.c.h.b16 %v799
    %v853 = vunpack.c.l.b16 %v800
    %v854 = vunpack.c.h.b16 %v800
    %v855 = vunpack.c.l.b16 %v801
    %v856 = vunpack.c.h.b16 %v801
    %v857 = vunpack.c.l.b16 %v802
    %v858 = vunpack.c.h.b16 %v802
    %v859 = vunpack.c.l.b16 %v803
    %v860 = vunpack.c.h.b16 %v803
    %v861 = vunpack.c.l.b16 %v804
    %v862 = vunpack.c.h.b16 %v804
    %v863 = vunpack.c.l.b16 %v805
    %v864 = vunpack.c.h.b16 %v805
    %v865 = vunpack.c.l.b16 %v806
    %v866 = vunpack.c.h.b16 %v806
    %v867 = vunpack.c.l.b16 %v807
    %v868 = vunpack.c.h.b16 %v807
    %v869 = vunpack.c.l.b16 %v808
    %v870 = vunpack.c.h.b16 %v808
    %v871 = vunpack.c.l.b16 %v809
    %v872 = vunpack.c.h.b16 %v809
    %v873 = vunpack.c.l.b16 %v810
    %v874 = vunpack.c.h.b16 %v810
    %v875 = vunpack.c.l.b16 %v811
    %v876 = vunpack.c.h.b16 %v811
    %v877 = vunpack.c.l.b16 %v812
    %v878 = vunpack.c.h.b16 %v812
    %v879 = vpack.c.b16 %v855, %v847
    %v880 = vpack.c.b16 %v856, %v848
    %v881 = vpack.c.b16 %v857, %v849
    %v882 = vpack.c.b16 %v858, %v850
    %v883 = vpack.c.b16 %v859, %v851
    %v884 = vpack.c.b16 %v860, %v852
    %v885 = vpack.c.b16 %v861, %v853
    %v886 = vpack.c.b16 %v862, %v854
    %v887 = vpack.c.b16 %v871, %v863
    %v888 = vpack.c.b16 %v872, %v864
    %v889 = vpack.c.b16 %v873, %v865
    %v890 = vpack.c.b16 %v874, %v866
    %v891 = vpack.c.b16 %v875, %v867
    %v892 = vpack.c.b16 %v876, %v868
    %v893 = vpack.c.b16 %v877, %v869
    %v894 = vpack.c.b16 %v878, %v870
    %v912 = vsel %vm737, %v796, 0
    %914 = vmatpush.bf16.msra.mxu0 0
    %915 = vmatpush.bf16.msra.mxu0 0
    %916 = vmatpush.bf16.msra.mxu0 0
    %917 = vmatpush.bf16.msra.mxu0 0
    %918 = vmatpush.bf16.msra.mxu0 0
    %919 = vmatpush.bf16.msra.mxu0 0
    %920 = vmatpush.bf16.msra.mxu0 %v887
    %921 = vmatpush.bf16.msra.mxu0 %v879
    %922 = vmatmul.bf16.gmra.mxu0 %v912
    %v923 = vpop.f32.mrf.mxu0
    %v924 = vadd.f32 %v815, %v923
    %v925 = vpop.f32.mrf.mxu0
    %926 = vdwg.mxu0
    %927 = vmatpush.bf16.msra.mxu0 0
    %928 = vmatpush.bf16.msra.mxu0 0
    %929 = vmatpush.bf16.msra.mxu0 0
    %930 = vmatpush.bf16.msra.mxu0 0
    %931 = vmatpush.bf16.msra.mxu0 0
    %932 = vmatpush.bf16.msra.mxu0 0
    %933 = vmatpush.bf16.msra.mxu0 %v888
    %934 = vmatpush.bf16.msra.mxu0 %v880
    %935 = vmatmul.bf16.gmra.mxu0 %v912
    %v936 = vpop.f32.mrf.mxu0
    %v937 = vadd.f32 %v816, %v936
    %v938 = vpop.f32.mrf.mxu0
    %939 = vdwg.mxu0
    %940 = vmatpush.bf16.msra.mxu0 0
    %941 = vmatpush.bf16.msra.mxu0 0
    %942 = vmatpush.bf16.msra.mxu0 0
    %943 = vmatpush.bf16.msra.mxu0 0
    %944 = vmatpush.bf16.msra.mxu0 0
    %945 = vmatpush.bf16.msra.mxu0 0
    %946 = vmatpush.bf16.msra.mxu0 %v889
    %947 = vmatpush.bf16.msra.mxu0 %v881
    %948 = vmatmul.bf16.gmra.mxu0 %v912
    %v949 = vpop.f32.mrf.mxu0
    %v950 = vadd.f32 %v817, %v949
    %v951 = vpop.f32.mrf.mxu0
    %952 = vdwg.mxu0
    %953 = vmatpush.bf16.msra.mxu0 0
    %954 = vmatpush.bf16.msra.mxu0 0
    %955 = vmatpush.bf16.msra.mxu0 0
    %956 = vmatpush.bf16.msra.mxu0 0
    %957 = vmatpush.bf16.msra.mxu0 0
    %958 = vmatpush.bf16.msra.mxu0 0
    %959 = vmatpush.bf16.msra.mxu0 %v890
    %960 = vmatpush.bf16.msra.mxu0 %v882
    %961 = vmatmul.bf16.gmra.mxu0 %v912
    %v962 = vpop.f32.mrf.mxu0
    %v963 = vadd.f32 %v818, %v962
    %v964 = vpop.f32.mrf.mxu0
    %965 = vdwg.mxu0
    %966 = vmatpush.bf16.msra.mxu0 0
    %967 = vmatpush.bf16.msra.mxu0 0
    %968 = vmatpush.bf16.msra.mxu0 0
    %969 = vmatpush.bf16.msra.mxu0 0
    %970 = vmatpush.bf16.msra.mxu0 0
    %971 = vmatpush.bf16.msra.mxu0 0
    %972 = vmatpush.bf16.msra.mxu0 %v891
    %973 = vmatpush.bf16.msra.mxu0 %v883
    %974 = vmatmul.bf16.gmra.mxu0 %v912
    %v975 = vpop.f32.mrf.mxu0
    %v976 = vadd.f32 %v819, %v975
    %v977 = vpop.f32.mrf.mxu0
    %978 = vdwg.mxu0
    %979 = vmatpush.bf16.msra.mxu0 0
    %980 = vmatpush.bf16.msra.mxu0 0
    %981 = vmatpush.bf16.msra.mxu0 0
    %982 = vmatpush.bf16.msra.mxu0 0
    %983 = vmatpush.bf16.msra.mxu0 0
    %984 = vmatpush.bf16.msra.mxu0 0
    %985 = vmatpush.bf16.msra.mxu0 %v892
    %986 = vmatpush.bf16.msra.mxu0 %v884
    %987 = vmatmul.bf16.gmra.mxu0 %v912
    %v988 = vpop.f32.mrf.mxu0
    %v989 = vadd.f32 %v820, %v988
    %v990 = vpop.f32.mrf.mxu0
    %991 = vdwg.mxu0
    %992 = vmatpush.bf16.msra.mxu0 0
    %993 = vmatpush.bf16.msra.mxu0 0
    %994 = vmatpush.bf16.msra.mxu0 0
    %995 = vmatpush.bf16.msra.mxu0 0
    %996 = vmatpush.bf16.msra.mxu0 0
    %997 = vmatpush.bf16.msra.mxu0 0
    %998 = vmatpush.bf16.msra.mxu0 %v893
    %999 = vmatpush.bf16.msra.mxu0 %v885
    %1000 = vmatmul.bf16.gmra.mxu0 %v912
    %v1001 = vpop.f32.mrf.mxu0
    %v1002 = vadd.f32 %v821, %v1001
    %v1003 = vpop.f32.mrf.mxu0
    %1004 = vdwg.mxu0
    %1005 = vmatpush.bf16.msra.mxu0 0
    %1006 = vmatpush.bf16.msra.mxu0 0
    %1007 = vmatpush.bf16.msra.mxu0 0
    %1008 = vmatpush.bf16.msra.mxu0 0
    %1009 = vmatpush.bf16.msra.mxu0 0
    %1010 = vmatpush.bf16.msra.mxu0 0
    %1011 = vmatpush.bf16.msra.mxu0 %v894
    %1012 = vmatpush.bf16.msra.mxu0 %v886
    %1013 = vmatmul.bf16.gmra.mxu0 %v912
    %v1014 = vpop.f32.mrf.mxu0
    %v1015 = vadd.f32 %v822, %v1014
    %v1016 = vpop.f32.mrf.mxu0
    %1017 = vdwg.mxu0
    %v1018 = vand.u32 2147483647, %v924
    %v1019 = vand.u32 2147483647, %v937
    %v1020 = vand.u32 2147483647, %v950
    %v1021 = vand.u32 2147483647, %v963
    %v1022 = vand.u32 2147483647, %v976
    %v1023 = vand.u32 2147483647, %v989
    %v1024 = vand.u32 2147483647, %v1002
    %v1025 = vand.u32 2147483647, %v1015
    %v1026 = vsub.f32 0.0, %v1018
    %v1027 = vsub.f32 0.0, %v1019
    %v1028 = vsub.f32 0.0, %v1020
    %v1029 = vsub.f32 0.0, %v1021
    %v1030 = vsub.f32 0.0, %v1022
    %v1031 = vsub.f32 0.0, %v1023
    %v1032 = vsub.f32 0.0, %v1024
    %v1033 = vsub.f32 0.0, %v1025
    %v1034 = vmul.f32 %v1026, 1.442695
    %v1035 = vpow.pop %v1034
    %v1036 = vmul.f32 %v1027, 1.442695
    %v1037 = vpow.pop %v1036
    %v1038 = vmul.f32 %v1028, 1.442695
    %v1039 = vpow.pop %v1038
    %v1040 = vmul.f32 %v1029, 1.442695
    %v1041 = vpow.pop %v1040
    %v1042 = vmul.f32 %v1030, 1.442695
    %v1043 = vpow.pop %v1042
    %v1044 = vmul.f32 %v1031, 1.442695
    %v1045 = vpow.pop %v1044
    %v1046 = vmul.f32 %v1032, 1.442695
    %v1047 = vpow.pop %v1046
    %v1048 = vmul.f32 %v1033, 1.442695
    %v1049 = vpow.pop %v1048
    %v1050 = vadd.f32 %v1035, 1.0
    %v1051 = vadd.f32 %v1037, 1.0
    %v1052 = vadd.f32 %v1039, 1.0
    %v1053 = vadd.f32 %v1041, 1.0
    %v1054 = vadd.f32 %v1043, 1.0
    %v1055 = vadd.f32 %v1045, 1.0
    %v1056 = vadd.f32 %v1047, 1.0
    %v1057 = vadd.f32 %v1049, 1.0
    %v1058 = vrcp.pop %v1050
    %v1059 = vrcp.pop %v1051
    %v1060 = vrcp.pop %v1052
    %v1061 = vrcp.pop %v1053
    %v1062 = vrcp.pop %v1054
    %v1063 = vrcp.pop %v1055
    %v1064 = vrcp.pop %v1056
    %v1065 = vrcp.pop %v1057
    %vm1066 = vcmp.ge.f32.partialorder %v924, 0.0
    %vm1067 = vcmp.ge.f32.partialorder %v937, 0.0
    %vm1068 = vcmp.ge.f32.partialorder %v950, 0.0
    %vm1069 = vcmp.ge.f32.partialorder %v963, 0.0
    %vm1070 = vcmp.ge.f32.partialorder %v976, 0.0
    %vm1071 = vcmp.ge.f32.partialorder %v989, 0.0
    %vm1072 = vcmp.ge.f32.partialorder %v1002, 0.0
    %vm1073 = vcmp.ge.f32.partialorder %v1015, 0.0
    %v1074 = vmul.f32 %v1035, %v1058
    %v1075 = vmul.f32 %v1037, %v1059
    %v1076 = vmul.f32 %v1039, %v1060
    %v1077 = vmul.f32 %v1041, %v1061
    %v1078 = vmul.f32 %v1043, %v1062
    %v1079 = vmul.f32 %v1045, %v1063
    %v1080 = vmul.f32 %v1047, %v1064
    %v1081 = vmul.f32 %v1049, %v1065
    %v1082 = vsel %vm1066, %v1058, %v1074
    %v1083 = vsel %vm1067, %v1059, %v1075
    %v1084 = vsel %vm1068, %v1060, %v1076
    %v1085 = vsel %vm1069, %v1061, %v1077
    %v1086 = vsel %vm1070, %v1062, %v1078
    %v1087 = vsel %vm1071, %v1063, %v1079
    %v1088 = vsel %vm1072, %v1064, %v1080
    %v1089 = vsel %vm1073, %v1065, %v1081
    %v1098 = vrot.slane %v1083, 6
    %v1099 = vrot.slane %v1084, 4
    %v1100 = vrot.slane %v1085, 2
    %v1101 = vrot.slane %v1087, 6
    %v1102 = vrot.slane %v1088, 4
    %v1103 = vrot.slane %v1089, 2
    %vm1104 = vcmask 1041408
    %v1105 = vsel %vm1104, %v1082, %v1098
    %vm1106 = vcmask 1045508
    %v1107 = vsel %vm1106, %v1099, %v1100
    %v1108 = vsel %vm778, %v1105, %v1107
    %v1109 = vsel %vm1104, %v1086, %v1101
    %v1110 = vsel %vm1106, %v1102, %v1103
    %v1111 = vsel %vm778, %v1109, %v1110
    %vm1112 = vcmask 1043458
    %v1113 = vsel %vm1112, %v1082, %v1098
    %vm1114 = vcmask 1045504
    %v1115 = vsel %vm1114, %v1100, %v1099
    %vm1116 = vcmask 1045506
    %v1117 = vsel %vm1116, %v1113, %v1115
    %v1118 = vrot.slane %v1117, 2
    %v1119 = vsel %vm1112, %v1086, %v1101
    %v1120 = vsel %vm1114, %v1103, %v1102
    %v1121 = vsel %vm1116, %v1119, %v1120
    %v1122 = vrot.slane %v1121, 2
    %v1123 = vsel %vm1106, %v1082, %v1098
    %v1124 = vsel %vm1104, %v1099, %v1100
    %v1125 = vsel %vm778, %v1124, %v1123
    %v1126 = vrot.slane %v1125, 4
    %v1127 = vsel %vm1106, %v1086, %v1101
    %v1128 = vsel %vm1104, %v1102, %v1103
    %v1129 = vsel %vm778, %v1128, %v1127
    %v1130 = vrot.slane %v1129, 4
    %v1131 = vsel %vm1114, %v1098, %v1082
    %v1132 = vsel %vm1112, %v1099, %v1100
    %v1133 = vsel %vm1116, %v1132, %v1131
    %v1134 = vrot.slane %v1133, 6
    %v1135 = vsel %vm1114, %v1101, %v1086
    %v1136 = vsel %vm1112, %v1102, %v1103
    %v1137 = vsel %vm1116, %v1136, %v1135
    %v1138 = vrot.slane %v1137, 6
    %1147 = vst [vmem:[#allocation2] sm:$0xff] %v1108
    %1148 = vst [vmem:[#allocation2 + $0x8] sm:$0xff] %v1111
    %1149 = vst [vmem:[#allocation2 + $0x10] sm:$0xff] %v1118
    %1150 = vst [vmem:[#allocation2 + $0x18] sm:$0xff] %v1122
    %1151 = vst [vmem:[#allocation2 + $0x20] sm:$0xff] %v1126
    %1152 = vst [vmem:[#allocation2 + $0x28] sm:$0xff] %v1130
    %1153 = vst [vmem:[#allocation2 + $0x30] sm:$0xff] %v1134
    %1154 = vst [vmem:[#allocation2 + $0x38] sm:$0xff] %v1138
    %1155 = vst [vmem:[#allocation4] sm:$0xff] %v751
    // Predicated region
    $region42: #{tpu_custom_call.1} parent=1 // pred_check
      _
    $region43: #{tpu_custom_call.1} parent=1 // pred_check_branch
      %1157 = sbr.rel (0) target = $region45
    $region44: #{tpu_custom_call.1} parent=1 // pred_region
      %1159 = vsyncadd [#allocation3], 768
      %s1160 = sshll.u32 [#allocation2], 4
      %s1161 = int_to_ptr.vmem [resolvable:$true] %s1160
      %s1162 = sshll.u32 %s10, 4
      %s1163 = int_to_ptr.hbm [resolvable:$true] %s1162
      %1168 = dma.vmem_to_hbm [thread:$0]  %s1161, 256, %s1163, [#allocation3], 256, 256, 16
    $region45: #{tpu_custom_call.1} parent=1 // pred_fallthru
      _
    // Predicated region
    $region46: #{tpu_custom_call.1} parent=1 // pred_check
      _
    $region47: #{tpu_custom_call.1} parent=1 // pred_check_branch
      %1170 = sbr.rel (0) target = $region49
    $region48: #{tpu_custom_call.1} parent=1 // pred_region
      %1172 = vsyncadd [#allocation5], 96
      %s1173 = sshll.u32 [#allocation4], 4
      %s1174 = int_to_ptr.vmem [resolvable:$true] %s1173
      %s1175 = sshll.u32 %s11, 4
      %s1176 = int_to_ptr.hbm [resolvable:$true] %s1175
      %1181 = dma.vmem_to_hbm [thread:$0]  %s1174, 32, %s1176, [#allocation5], 32, 32, 2
    $region49: #{tpu_custom_call.1} parent=1 // pred_fallthru
      _
    // Predicated region
    $region50: #{tpu_custom_call.1} parent=1 // pred_check
      _
    $region51: #{tpu_custom_call.1} parent=1 // pred_check_branch
      %1183 = sbr.rel (0) target = $region53
    $region52: #{tpu_custom_call.1} parent=1 // pred_region
      %1185 = dma.done [#allocation3], 1024
    $region53: #{tpu_custom_call.1} parent=1 // pred_fallthru
      _
    // Predicated region
    $region54: #{tpu_custom_call.1} parent=1 // pred_check
      _
    $region55: #{tpu_custom_call.1} parent=1 // pred_check_branch
      %1187 = sbr.rel (0) target = $region57
    $region56: #{tpu_custom_call.1} parent=1 // pred_region
      %1189 = dma.done [#allocation5], 128
    $region57: #{tpu_custom_call.1} parent=1 // pred_fallthru
      _
    %1190 = vsyncpa [#allocation3], 1
    %1191 = vsyncpa [#allocation5], 1

</llo_original>
